<compile_context>
chip_gen: v6e
topology: v6e:2x2x1
jax: 0.10.0
libtpu: 0.0.40
codegen_flags: <defaults>
</compile_context>

<pallas_src>
import jax
import jax.numpy as jnp
from jax.experimental import pallas as pl
from jax.experimental.pallas import tpu as pltpu


def _round_up(x, m):
    return ((x + m - 1) // m) * m


def _gold_price_kernel(x_ref, w1_ref, b1_ref, w2_ref, b2_ref, o_ref):
    # x_ref:  (TB/P, P*F)  packed input (P batch rows per 128-lane row)
    # w1_ref: (P*F, P*H)   block-diagonal layer1 weight (resident)
    # b1_ref: (1, P*H)     layer1 bias tiled P times (resident)
    # w2_ref: (P*H, P)     block-diagonal layer2 weight (resident)
    # b2_ref: (1, 1)       layer2 bias (SMEM scalar)
    # o_ref:  (TB/P, P)    packed output
    x = x_ref[...]
    h = jnp.dot(x, w1_ref[...], preferred_element_type=jnp.float32)
    h = h + b1_ref[...]
    # LeakyReLU: slope 0.01 < 1, so max(h, 0.01*h) == where(h >= 0, h, 0.01*h).
    h = jnp.maximum(h, 0.01 * h)
    y = jnp.dot(h, w2_ref[...], preferred_element_type=jnp.float32)
    o_ref[...] = (y + b2_ref[0, 0]).astype(o_ref.dtype)


def _xla_reference(x, w1, b1, w2, b2):
    h = x @ w1 + b1.reshape(1, -1)
    h = jnp.maximum(h, 0.01 * h)
    return h @ w2.reshape(-1, 1) + jnp.asarray(b2).reshape(1, 1)


def gold_price_nn_forward(x, w1, b1, w2, b2, *, block_rows=4096, use_pallas=None):
    """GoldPriceNN forward.

    x: (B, F); w1: (F, H); b1: (H,) or (1, H); w2: (H, 1); b2: scalar-like.
    Returns (B, 1).
    """
    B, F = x.shape
    H = w1.shape[1]

    if use_pallas is None:
        # A tiny batch is a single padded tile: Pallas dispatch is pure
        # overhead and XLA fuses this small MLP into neighbors for free.
        use_pallas = B >= 1024
    if F > 128:
        # TODO(synk): lane-packing scheme assumes F <= 128; fall back to XLA.
        use_pallas = False
    if not use_pallas:
        return _xla_reference(x, w1, b1, w2, b2)

    dt = x.dtype

    # --- Lane packing: P batch rows per 128-lane register. -------------------
    Fp = F if 128 % F == 0 else min(1 << (F - 1).bit_length(), 128)
    if Fp != F:
        x = jnp.pad(x, ((0, 0), (0, Fp - F)))
        w1 = jnp.pad(w1, ((0, Fp - F), (0, 0)))
    P = 128 // Fp

    eye_p = jnp.eye(P, dtype=dt)
    w1_block = jnp.kron(eye_p, w1.astype(dt))                    # (P*Fp, P*H)
    b1_packed = jnp.tile(b1.reshape(1, H).astype(dt), (1, P))    # (1, P*H)
    w2_block = jnp.kron(eye_p, w2.reshape(H, 1).astype(dt))      # (P*H, P)
    b2_s = jnp.asarray(b2, dt).reshape(1, 1)                     # SMEM scalar

    # --- Batch tiling. --------------------------------------------------------
    TB = _round_up(min(block_rows, _round_up(B, 128)), 128)
    B_pad = _round_up(B, TB)
    G = B_pad // TB
    # v7x: batch grid is sharded over 2 TensorCores; prefer an even number of
    # grid steps so neither core idles (no effect on single-TC v5e/v6e).
    while G > 1 and G % 2 == 1 and TB % 256 == 0:
        TB //= 2
        B_pad = _round_up(B, TB)
        G = B_pad // TB

    if B_pad != B:
        x = jnp.pad(x, ((0, B_pad - B), (0, 0)))
    # Free contiguous reshape: packed row r holds batch rows r*P .. r*P+P-1.
    x_packed = x.reshape(B_pad // P, P * Fp)
    tb_p = TB // P  # multiple of 8 (TB is a multiple of 128, P <= 128)

    out_packed = pl.pallas_call(
        _gold_price_kernel,
        out_shape=jax.ShapeDtypeStruct((B_pad // P, P), dt),
        grid=(G,),
        in_specs=[
            pl.BlockSpec((tb_p, P * Fp), lambda i: (i, 0)),      # streamed x tiles
            pl.BlockSpec((P * Fp, P * H), lambda i: (0, 0)),     # resident W1 (blockdiag)
            pl.BlockSpec((1, P * H), lambda i: (0, 0)),          # resident b1 (tiled)
            pl.BlockSpec((P * H, P), lambda i: (0, 0)),          # resident W2 (blockdiag)
            pl.BlockSpec(memory_space=pltpu.MemorySpace.SMEM),   # scalar b2
        ],
        out_specs=pl.BlockSpec((tb_p, P), lambda i: (i, 0)),
        compiler_params=pltpu.CompilerParams(
            dimension_semantics=("parallel",),
            vmem_limit_bytes=32 * 1024 * 1024,
        ),
    )(x_packed, w1_block, b1_packed, w2_block, b2_s)

    # Free contiguous unpack back to (B, 1).
    return out_packed.reshape(B_pad, 1)[:B]


if __name__ == "__main__":
    key = jax.random.PRNGKey(0)
    k_x, k_w1, k_b1, k_w2, k_b2, k_x2 = jax.random.split(key, 6)

    B = 8            # batch (small demo shape)
    input_size = 16  # features
    H = 4            # hidden units (fixed by the module)

    # Deterministic params (mimicking nn.Linear's uniform bound 1/sqrt(fan_in)).
    bound1 = 1.0 / jnp.sqrt(float(input_size))
    w1 = jax.random.uniform(k_w1, (input_size, H), jnp.float32, -bound1, bound1)
    b1 = jax.random.uniform(k_b1, (1, H), jnp.float32, -bound1, bound1)
    bound2 = 1.0 / jnp.sqrt(float(H))
    w2 = jax.random.uniform(k_w2, (H, 1), jnp.float32, -bound2, bound2)
    b2 = jax.random.uniform(k_b2, (1, 1), jnp.float32, -bound2, bound2)

    # Small-shape run, forced through the Pallas kernel.
    x = jax.random.normal(k_x, (B, input_size), dtype=jnp.float32)
    out = jax.block_until_ready(
        gold_price_nn_forward(x, w1, b1, w2, b2, use_pallas=True))
    ref = _xla_reference(x, w1, b1, w2, b2)
    assert out.shape == (B, 1)
    assert jnp.allclose(out, ref, atol=1e-5, rtol=1e-5)

    # Non-multiple batch: exercises padding, a multi-step grid, and the
    # even-grid heuristic (block_rows=512 -> 10 grid steps of 128 rows).
    B2 = 1200
    x2 = jax.random.normal(k_x2, (B2, input_size), dtype=jnp.float32)
    out2 = jax.block_until_ready(
        gold_price_nn_forward(x2, w1, b1, w2, b2, block_rows=512, use_pallas=True))
    ref2 = _xla_reference(x2, w1, b1, w2, b2)
    assert out2.shape == (B2, 1)
    assert jnp.allclose(out2, ref2, atol=1e-5, rtol=1e-5)

    print("KERNEL_OK")
</pallas_src>

<mosaic_0001>
module attributes {stable_mosaic.version = 11 : i64} {
  func.func @_gold_price_kernel(%arg0: i32, %arg1: memref<16x128xf32, #tpu.memory_space<vmem>>, %arg2: memref<128x32xf32, #tpu.memory_space<vmem>>, %arg3: memref<1x32xf32, #tpu.memory_space<vmem>>, %arg4: memref<32x8xf32, #tpu.memory_space<vmem>>, %arg5: memref<1x1xf32, #tpu.memory_space<smem>>, %arg6: memref<16x8xf32, #tpu.memory_space<vmem>>) attributes {dimension_semantics = [#tpu.dimension_semantics<parallel>], iteration_bounds = array<i64: 1>, scalar_prefetch = 0 : i64, scratch_operands = 0 : i64, tpu.core_type = #tpu.core_type<tc>, window_params = [{transform_indices = @transform_0, window_bounds = array<i64: 16, 128>}, {pipeline_mode = #tpu.pipeline_mode<synchronous>, transform_indices = @transform_1, window_bounds = array<i64: 128, 32>}, {pipeline_mode = #tpu.pipeline_mode<synchronous>, transform_indices = @transform_2, window_bounds = array<i64: 1, 32>}, {pipeline_mode = #tpu.pipeline_mode<synchronous>, transform_indices = @transform_3, window_bounds = array<i64: 32, 8>}, {transform_indices = @transform_4, window_bounds = array<i64: 1, 1>}, {transform_indices = @transform_5, window_bounds = array<i64: 16, 8>}]} {
    %c0 = arith.constant 0 : index
    %c0_0 = arith.constant 0 : index
    %0 = vector.load %arg1[%c0, %c0_0] : memref<16x128xf32, #tpu.memory_space<vmem>>, vector<16x128xf32>
    %c0_1 = arith.constant 0 : index
    %c0_2 = arith.constant 0 : index
    %1 = vector.load %arg2[%c0_1, %c0_2] : memref<128x32xf32, #tpu.memory_space<vmem>>, vector<128x32xf32>
    %cst = arith.constant dense<0.000000e+00> : vector<16x32xf32>
    %2 = tpu.matmul %0, %1, %cst {dimension_numbers = #tpu.dot_dimension_numbers<[1], [0], [0], [1], [0, 0, 1, 1], [], []>} : vector<16x128xf32>, vector<128x32xf32>, vector<16x32xf32> -> vector<16x32xf32>
    %c0_3 = arith.constant 0 : index
    %c0_4 = arith.constant 0 : index
    %3 = vector.load %arg3[%c0_3, %c0_4] : memref<1x32xf32, #tpu.memory_space<vmem>>, vector<1x32xf32>
    %4 = vector.broadcast %3 : vector<1x32xf32> to vector<16x32xf32>
    %5 = arith.addf %2, %4 : vector<16x32xf32>
    %cst_5 = arith.constant 0.00999999977 : f32
    %6 = vector.broadcast %cst_5 : f32 to vector<16x32xf32>
    %7 = arith.mulf %6, %5 : vector<16x32xf32>
    %8 = arith.maximumf %5, %7 : vector<16x32xf32>
    %c0_6 = arith.constant 0 : index
    %c0_7 = arith.constant 0 : index
    %9 = vector.load %arg4[%c0_6, %c0_7] : memref<32x8xf32, #tpu.memory_space<vmem>>, vector<32x8xf32>
    %cst_8 = arith.constant dense<0.000000e+00> : vector<16x8xf32>
    %10 = tpu.matmul %8, %9, %cst_8 {dimension_numbers = #tpu.dot_dimension_numbers<[1], [0], [0], [1], [0, 0, 1, 1], [], []>} : vector<16x32xf32>, vector<32x8xf32>, vector<16x8xf32> -> vector<16x8xf32>
    %c0_9 = arith.constant 0 : index
    %c0_10 = arith.constant 0 : index
    %11 = memref.load %arg5[%c0_9, %c0_10] : memref<1x1xf32, #tpu.memory_space<smem>>
    %12 = vector.broadcast %11 : f32 to vector<16x8xf32>
    %13 = arith.addf %10, %12 : vector<16x8xf32>
    %c0_11 = arith.constant 0 : index
    %c0_12 = arith.constant 0 : index
    %14 = vector.load %arg6[%c0_11, %c0_12] : memref<16x8xf32, #tpu.memory_space<vmem>>, vector<16x8xf32>
    tpu.vector_store %arg6[%c0_11, %c0_12], %13 {strides = array<i32>} : memref<16x8xf32, #tpu.memory_space<vmem>>, vector<16x8xf32>,
    return
  }
  func.func @transform_0(%arg0: i32) -> (i32, i32) {
    %c0_i32 = arith.constant 0 : i32
    %c0_i32_0 = arith.constant 0 : i32
    return %arg0, %c0_i32 : i32, i32
  }
  func.func @transform_1(%arg0: i32) -> (i32, i32) {
    %c0_i32 = arith.constant 0 : i32
    %c0_i32_0 = arith.constant 0 : i32
    %c0_i32_1 = arith.constant 0 : i32
    return %c0_i32, %c0_i32_0 : i32, i32
  }
  func.func @transform_2(%arg0: i32) -> (i32, i32) {
    %c0_i32 = arith.constant 0 : i32
    %c0_i32_0 = arith.constant 0 : i32
    %c0_i32_1 = arith.constant 0 : i32
    return %c0_i32, %c0_i32_0 : i32, i32
  }
  func.func @transform_3(%arg0: i32) -> (i32, i32) {
    %c0_i32 = arith.constant 0 : i32
    %c0_i32_0 = arith.constant 0 : i32
    %c0_i32_1 = arith.constant 0 : i32
    return %c0_i32, %c0_i32_0 : i32, i32
  }
  func.func @transform_4(%arg0: i32) -> (i32, i32) {
    %c0_i32 = arith.constant 0 : i32
    %c0_i32_0 = arith.constant 0 : i32
    %c0_i32_1 = arith.constant 0 : i32
    return %c0_i32, %c0_i32_0 : i32, i32
  }
  func.func @transform_5(%arg0: i32) -> (i32, i32) {
    %c0_i32 = arith.constant 0 : i32
    %c0_i32_0 = arith.constant 0 : i32
    return %arg0, %c0_i32 : i32, i32
  }
}

</mosaic_0001>

<llo_original>
// kernel: tpu_custom_call.1
$region0: #{tpu_custom_call.1}
  #allocation0 [shape = 'u32[]', space=smem, size = 0x4, offset = 0x4, fixed_abs, tag = 'smem constant byte address 0x4 - core index']
  #allocation1 [shape = 'u32[144,128]{1,0:T(1,128)}', space=vmem, size = 0x12000, scoped, tag = 'internal scratch']
  #allocation2 [shape = 'f32[1,1]{1,0:T(1,128)S(6)}', space=smem, size = 0x200, scoped, tag = 'scoped memory for tpu_custom_call.1']
  %s0 = inlined_call_operand.vmem [shape: f32[16,128], index: 0, kind: input, shape index: {}]
  %s1 = inlined_call_operand.vmem [shape: f32[128,32], index: 1, kind: input, shape index: {}]
  %s2 = inlined_call_operand.vmem [shape: f32[1,32], index: 2, kind: input, shape index: {}]
  %s3 = inlined_call_operand.vmem [shape: f32[32,8], index: 3, kind: input, shape index: {}]
  %s4 = inlined_call_operand.<no memory space> [shape: f32[1,1], index: 4, kind: input, shape index: {}]
  %s5 = inlined_call_operand.vmem [shape: f32[16,8], index: 5, kind: output, shape index: {}]
  %s6 = sld [smem:[#allocation0]]
  $region30: #{tpu_custom_call.1} parent=0
    _
  %s8 = ssub.s32 1, %s6
  %s9 = scalar_select 0, %s8, %s6
  %10 = sst [smem:[#allocation2]] %s4
  // Predicated region
  $region2: #{tpu_custom_call.1} parent=0 // pred_check
    _
  $region3: #{tpu_custom_call.1} parent=0 // pred_check_branch
    %12 = sbr.rel (0) target = $region5
  $region4: #{tpu_custom_call.1} parent=0 // pred_region
    _
  $region5: #{tpu_custom_call.1} parent=0 // pred_fallthru
    _
  // Predicated region
  $region6: #{tpu_custom_call.1} parent=0 // pred_check
    _
  $region7: #{tpu_custom_call.1} parent=0 // pred_check_branch
    %14 = sbr.rel (0) target = $region9
  $region8: #{tpu_custom_call.1} parent=0 // pred_region
    _
  $region9: #{tpu_custom_call.1} parent=0 // pred_fallthru
    _
  // Predicated region
  $region10: #{tpu_custom_call.1} parent=0 // pred_check
    _
  $region11: #{tpu_custom_call.1} parent=0 // pred_check_branch
    %16 = sbr.rel (0) target = $region13
  $region12: #{tpu_custom_call.1} parent=0 // pred_region
    _
  $region13: #{tpu_custom_call.1} parent=0 // pred_fallthru
    _
  // Predicated region
  $region14: #{tpu_custom_call.1} parent=0 // pred_check
    _
  $region15: #{tpu_custom_call.1} parent=0 // pred_check_branch
    %18 = sbr.rel (0) target = $region17
  $region16: #{tpu_custom_call.1} parent=0 // pred_region
    _
  $region17: #{tpu_custom_call.1} parent=0 // pred_fallthru
    _
  // Predicated region
  $region18: #{tpu_custom_call.1} parent=0 // pred_check
    _
  $region19: #{tpu_custom_call.1} parent=0 // pred_check_branch
    %20 = sbr.rel (0) target = $region21
  $region20: #{tpu_custom_call.1} parent=0 // pred_region
    _
  $region21: #{tpu_custom_call.1} parent=0 // pred_fallthru
    _
  %v21 = vld [vmem:[%s0] sm:$0xff]
  %v22 = vld [vmem:[%s0 + $0x8] sm:$0xff]
  %v23 = vld [vmem:[%s1] sm:$0xff]
  %v24 = vld [vmem:[%s1 + $0x8] sm:$0xff]
  %v25 = vld [vmem:[%s1 + $0x10] sm:$0xff]
  %v26 = vld [vmem:[%s1 + $0x18] sm:$0xff]
  %v27 = vld [vmem:[%s1 + $0x20] sm:$0xff]
  %v28 = vld [vmem:[%s1 + $0x28] sm:$0xff]
  %v29 = vld [vmem:[%s1 + $0x30] sm:$0xff]
  %v30 = vld [vmem:[%s1 + $0x38] sm:$0xff]
  %v31 = vld [vmem:[%s1 + $0x40] sm:$0xff]
  %v32 = vld [vmem:[%s1 + $0x48] sm:$0xff]
  %v33 = vld [vmem:[%s1 + $0x50] sm:$0xff]
  %v34 = vld [vmem:[%s1 + $0x58] sm:$0xff]
  %v35 = vld [vmem:[%s1 + $0x60] sm:$0xff]
  %v36 = vld [vmem:[%s1 + $0x68] sm:$0xff]
  %v37 = vld [vmem:[%s1 + $0x70] sm:$0xff]
  %v38 = vld [vmem:[%s1 + $0x78] sm:$0xff]
  %v39 = vld [vmem:[%s2] sm:$0x1]
  %v41 = vlaneseq
  %v42 = vshrl.u32 %v41, 7
  %v43 = vsub.s32 0, %v42
  %v44 = vrot.slane %v39, %v43
  %46 = vmatprep.subr.mxu0 0.0
  %47 = vmatpush1.msra.mxu0 %v38
  %48 = vmatprep.subr.mxu0 0.0
  %49 = vmatpush1.msra.mxu0 %v37
  %50 = vmatprep.subr.mxu0 0.0
  %51 = vmatpush1.msra.mxu0 %v36
  %52 = vmatprep.subr.mxu0 0.0
  %53 = vmatpush1.msra.mxu0 %v35
  %54 = vmatprep.subr.mxu0 0.0
  %55 = vmatpush1.msra.mxu0 %v34
  %56 = vmatprep.subr.mxu0 0.0
  %57 = vmatpush1.msra.mxu0 %v33
  %58 = vmatprep.subr.mxu0 0.0
  %59 = vmatpush1.msra.mxu0 %v32
  %60 = vmatprep.subr.mxu0 0.0
  %61 = vmatpush1.msra.mxu0 %v31
  %62 = vmatprep.subr.mxu0 0.0
  %63 = vmatpush1.msra.mxu0 %v30
  %64 = vmatprep.subr.mxu0 0.0
  %65 = vmatpush1.msra.mxu0 %v29
  %66 = vmatprep.subr.mxu0 0.0
  %67 = vmatpush1.msra.mxu0 %v28
  %68 = vmatprep.subr.mxu0 0.0
  %69 = vmatpush1.msra.mxu0 %v27
  %70 = vmatprep.subr.mxu0 0.0
  %71 = vmatpush1.msra.mxu0 %v26
  %72 = vmatprep.subr.mxu0 0.0
  %73 = vmatpush1.msra.mxu0 %v25
  %74 = vmatprep.subr.mxu0 0.0
  %75 = vmatpush1.msra.mxu0 %v24
  %76 = vmatprep.subr.mxu0 0.0
  %77 = vmatpush1.msra.mxu0 %v23
  %78 = vmatprep.subr.mxu0 0.0
  %79 = vmatpush2.msra.mxu0 0.0
  %80 = vmatprep.subr.mxu0 0.0
  %81 = vmatpush2.msra.mxu0 0.0
  %82 = vmatprep.subr.mxu0 0.0
  %83 = vmatpush2.msra.mxu0 0.0
  %84 = vmatprep.subr.mxu0 0.0
  %85 = vmatpush2.msra.mxu0 0.0
  %86 = vmatprep.subr.mxu0 0.0
  %87 = vmatpush2.msra.mxu0 0.0
  %88 = vmatprep.subr.mxu0 0.0
  %89 = vmatpush2.msra.mxu0 0.0
  %90 = vmatprep.subr.mxu0 0.0
  %91 = vmatpush2.msra.mxu0 0.0
  %92 = vmatprep.subr.mxu0 0.0
  %93 = vmatpush2.msra.mxu0 0.0
  %94 = vmatprep.subr.mxu0 0.0
  %95 = vmatpush2.msra.mxu0 0.0
  %96 = vmatprep.subr.mxu0 0.0
  %97 = vmatpush2.msra.mxu0 0.0
  %98 = vmatprep.subr.mxu0 0.0
  %99 = vmatpush2.msra.mxu0 0.0
  %100 = vmatprep.subr.mxu0 0.0
  %101 = vmatpush2.msra.mxu0 0.0
  %102 = vmatprep.subr.mxu0 0.0
  %103 = vmatpush2.msra.mxu0 0.0
  %104 = vmatprep.subr.mxu0 0.0
  %105 = vmatpush2.msra.mxu0 0.0
  %106 = vmatprep.subr.mxu0 0.0
  %107 = vmatpush2.msra.mxu0 0.0
  %108 = vmatprep.subr.mxu0 0.0
  %109 = vmatpush2.msra.mxu0 0.0
  %110 = vmatprep.mubr.f32.mxu0 0.0
  %111 = vmatmul.mubr.f32.gmra.mxu0 %v21
  %v112 = vpop.f32.mrf.mxu0
  %v113 = vadd.f32 %v44, %v112
  %v114 = vpop.f32.mrf.mxu0
  %115 = vmatprep.mubr.f32.mxu0 0.0
  %116 = vmatmul.mubr.f32.gmra.mxu0 %v22
  %v117 = vpop.f32.mrf.mxu0
  %v118 = vadd.f32 %v44, %v117
  %v119 = vpop.f32.mrf.mxu0
  %120 = vdwg.mxu0
  %v121 = vmul.f32 %v113, 0.01
  %v122 = vmul.f32 %v118, 0.01
  %v123 = vmax.f32 %v113, %v121
  %v124 = vmax.f32 %v118, %v122
  %v125 = vld [vmem:[%s3] sm:$0xff]
  %v126 = vld [vmem:[%s3 + $0x8] sm:$0xff]
  %v127 = vld [vmem:[%s3 + $0x10] sm:$0xff]
  %v128 = vld [vmem:[%s3 + $0x18] sm:$0xff]
  %s129 = sld [smem:[#allocation2]]
  %v130 = vstv %s129
  %vm131 = vcmask 261120
  %v133 = vsel %vm131, %v123, 0
  %v136 = vsel %vm131, %v124, 0
  %138 = vmatprep.subr.mxu0 0.0
  %139 = vmatpush1.msra.mxu0 0.0
  %140 = vmatprep.subr.mxu0 0.0
  %141 = vmatpush1.msra.mxu0 0.0
  %142 = vmatprep.subr.mxu0 0.0
  %143 = vmatpush1.msra.mxu0 0.0
  %144 = vmatprep.subr.mxu0 0.0
  %145 = vmatpush1.msra.mxu0 0.0
  %146 = vmatprep.subr.mxu0 0.0
  %147 = vmatpush1.msra.mxu0 0.0
  %148 = vmatprep.subr.mxu0 0.0
  %149 = vmatpush1.msra.mxu0 0.0
  %150 = vmatprep.subr.mxu0 0.0
  %151 = vmatpush1.msra.mxu0 0.0
  %152 = vmatprep.subr.mxu0 0.0
  %153 = vmatpush1.msra.mxu0 0.0
  %154 = vmatprep.subr.mxu0 0.0
  %155 = vmatpush1.msra.mxu0 0.0
  %156 = vmatprep.subr.mxu0 0.0
  %157 = vmatpush1.msra.mxu0 0.0
  %158 = vmatprep.subr.mxu0 0.0
  %159 = vmatpush1.msra.mxu0 0.0
  %160 = vmatprep.subr.mxu0 0.0
  %161 = vmatpush1.msra.mxu0 0.0
  %162 = vmatprep.subr.mxu0 0.0
  %163 = vmatpush1.msra.mxu0 %v128
  %164 = vmatprep.subr.mxu0 0.0
  %165 = vmatpush1.msra.mxu0 %v127
  %166 = vmatprep.subr.mxu0 0.0
  %167 = vmatpush1.msra.mxu0 %v126
  %168 = vmatprep.subr.mxu0 0.0
  %169 = vmatpush1.msra.mxu0 %v125
  %170 = vmatprep.subr.mxu0 0.0
  %171 = vmatpush2.msra.mxu0 0.0
  %172 = vmatprep.subr.mxu0 0.0
  %173 = vmatpush2.msra.mxu0 0.0
  %174 = vmatprep.subr.mxu0 0.0
  %175 = vmatpush2.msra.mxu0 0.0
  %176 = vmatprep.subr.mxu0 0.0
  %177 = vmatpush2.msra.mxu0 0.0
  %178 = vmatprep.subr.mxu0 0.0
  %179 = vmatpush2.msra.mxu0 0.0
  %180 = vmatprep.subr.mxu0 0.0
  %181 = vmatpush2.msra.mxu0 0.0
  %182 = vmatprep.subr.mxu0 0.0
  %183 = vmatpush2.msra.mxu0 0.0
  %184 = vmatprep.subr.mxu0 0.0
  %185 = vmatpush2.msra.mxu0 0.0
  %186 = vmatprep.subr.mxu0 0.0
  %187 = vmatpush2.msra.mxu0 0.0
  %188 = vmatprep.subr.mxu0 0.0
  %189 = vmatpush2.msra.mxu0 0.0
  %190 = vmatprep.subr.mxu0 0.0
  %191 = vmatpush2.msra.mxu0 0.0
  %192 = vmatprep.subr.mxu0 0.0
  %193 = vmatpush2.msra.mxu0 0.0
  %194 = vmatprep.subr.mxu0 0.0
  %195 = vmatpush2.msra.mxu0 0.0
  %196 = vmatprep.subr.mxu0 0.0
  %197 = vmatpush2.msra.mxu0 0.0
  %198 = vmatprep.subr.mxu0 0.0
  %199 = vmatpush2.msra.mxu0 0.0
  %200 = vmatprep.subr.mxu0 0.0
  %201 = vmatpush2.msra.mxu0 0.0
  %202 = vmatprep.mubr.f32.mxu0 0.0
  %203 = vmatmul.mubr.f32.gmra.mxu0 %v133
  %v204 = vpop.f32.mrf.mxu0
  %v205 = vadd.f32 %v130, %v204
  %v206 = vpop.f32.mrf.mxu0
  %207 = vmatprep.mubr.f32.mxu0 0.0
  %208 = vmatmul.mubr.f32.gmra.mxu0 %v136
  %v209 = vpop.f32.mrf.mxu0
  %v210 = vadd.f32 %v130, %v209
  %v211 = vpop.f32.mrf.mxu0
  %212 = vdwg.mxu0
  %vm213 = vcmask 64512
  %214 = vst.msk [vmem:[%s5] sm:$0xff] %vm213, %v205
  %215 = vst.msk [vmem:[%s5 + $0x8] sm:$0xff] %vm213, %v210
  // Predicated region
  $region22: #{tpu_custom_call.1} parent=0 // pred_check
    _
  $region23: #{tpu_custom_call.1} parent=0 // pred_check_branch
    %217 = sbr.rel (0) target = $region25
  $region24: #{tpu_custom_call.1} parent=0 // pred_region
    _
  $region25: #{tpu_custom_call.1} parent=0 // pred_fallthru
    _
  // Predicated region
  $region26: #{tpu_custom_call.1} parent=0 // pred_check
    _
  $region27: #{tpu_custom_call.1} parent=0 // pred_check_branch
    %219 = sbr.rel (0) target = $region29
  $region28: #{tpu_custom_call.1} parent=0 // pred_region
    _
  $region29: #{tpu_custom_call.1} parent=0 // pred_fallthru
    _

</llo_original>
